<compile_context>
chip_gen: v6e
topology: v6e:2x2x1
jax: 0.10.0
libtpu: 0.0.40
codegen_flags: <defaults>
</compile_context>

<pallas_src>
import functools

import jax
import jax.numpy as jnp
from jax.experimental import pallas as pl
from jax.experimental.pallas import tpu as pltpu

IMG = 14 * 14  # 196


def _softmax(logits):
    m = jnp.max(logits, axis=-1, keepdims=True)
    e = jnp.exp(logits - m)
    return e * pl.reciprocal(jnp.sum(e, axis=-1, keepdims=True), approx=True)


def _branch(x, w1, b1, w2, b2, w3, b3):
    h = jnp.maximum(jnp.dot(x, w1, preferred_element_type=jnp.float32) + b1, 0.0)
    h = jnp.maximum(jnp.dot(h, w2, preferred_element_type=jnp.float32) + b2, 0.0)
    logits = jnp.dot(h, w3, preferred_element_type=jnp.float32) + b3
    return _softmax(logits)


def fnn_shared_kernel(x_ref,
                      w1_ref, b1_ref, w2_ref, b2_ref, w3_ref, b3_ref,
                      w4a_ref, w4b_ref, b4_ref,
                      out_ref):
    """weight_sharing=True: both images go through the same branch weights.

    The two images are stacked along the batch (sublane) dim so the shared
    weights are used by a single matmul chain.
    """
    t = x_ref.shape[0]
    x1 = x_ref[:, 0:IMG]              # (T, 196)
    x2 = x_ref[:, IMG:2 * IMG]        # (T, 196)
    xcat = jnp.concatenate([x1, x2], axis=0)          # (2T, 196)

    p = _branch(xcat,
                w1_ref[...], b1_ref[...],
                w2_ref[...], b2_ref[...],
                w3_ref[...], b3_ref[...])              # (2T, 10)

    y1 = p[:t]                                         # (T, 10)
    y2 = p[t:]                                         # (T, 10)

    y = (jnp.dot(y1, w4a_ref[...], preferred_element_type=jnp.float32)
         + jnp.dot(y2, w4b_ref[...], preferred_element_type=jnp.float32)
         + b4_ref[...])                                # (T, oc)

    out_ref[:, 0:10] = y1
    out_ref[:, 10:20] = y2
    out_ref[:, 20:] = y


def fnn_separate_kernel(x_ref,
                        w1a_ref, b1a_ref, w2a_ref, b2a_ref, w3a_ref, b3a_ref,
                        w1b_ref, b1b_ref, w2b_ref, b2b_ref, w3b_ref, b3b_ref,
                        w4a_ref, w4b_ref, b4_ref,
                        out_ref):
    """weight_sharing=False: two independent branch weight sets."""
    y1 = _branch(x_ref[:, 0:IMG],
                 w1a_ref[...], b1a_ref[...],
                 w2a_ref[...], b2a_ref[...],
                 w3a_ref[...], b3a_ref[...])
    y2 = _branch(x_ref[:, IMG:2 * IMG],
                 w1b_ref[...], b1b_ref[...],
                 w2b_ref[...], b2b_ref[...],
                 w3b_ref[...], b3b_ref[...])

    y = (jnp.dot(y1, w4a_ref[...], preferred_element_type=jnp.float32)
         + jnp.dot(y2, w4b_ref[...], preferred_element_type=jnp.float32)
         + b4_ref[...])

    out_ref[:, 0:10] = y1
    out_ref[:, 10:20] = y2
    out_ref[:, 20:] = y


def init_params(key, output_channels):
    """PyTorch-style uniform(+/- 1/sqrt(fan_in)) init.

    Weights stored pre-transposed as (in, out); biases as (1, out).
    """
    def linear(k, fan_in, fan_out):
        kw, kb = jax.random.split(k)
        bound = 1.0 / float(fan_in) ** 0.5
        w = jax.random.uniform(kw, (fan_in, fan_out), jnp.float32, -bound, bound)
        b = jax.random.uniform(kb, (1, fan_out), jnp.float32, -bound, bound)
        return w, b

    ks = jax.random.split(key, 7)
    params = {}
    params["w1a"], params["b1a"] = linear(ks[0], IMG, 128)
    params["w2a"], params["b2a"] = linear(ks[1], 128, 64)
    params["w3a"], params["b3a"] = linear(ks[2], 64, 10)
    params["w1b"], params["b1b"] = linear(ks[3], IMG, 128)
    params["w2b"], params["b2b"] = linear(ks[4], 128, 64)
    params["w3b"], params["b3b"] = linear(ks[5], 64, 10)
    params["w4"], params["b4"] = linear(ks[6], 20, output_channels)
    return params


def _round_up(n, m):
    return ((n + m - 1) // m) * m


@functools.partial(jax.jit,
                   static_argnames=("weight_sharing", "auxiliary_loss", "tile_b"))
def fnn_forward(x, params, *, weight_sharing=True, auxiliary_loss=True,
                tile_b=512):
    """Forward pass equivalent to FNN.forward.  x: (B, 2, 14, 14) float32."""
    B = x.shape[0]
    oc = params["w4"].shape[1]
    out_w = 20 + oc

    # NCHW is contiguous, so this is a free view: row = [img0 | img1].
    x_flat = x.reshape(B, 2 * IMG)

    # Batch tiling (pad B up to a multiple of the tile).
    tile_b = min(tile_b, _round_up(B, 8))
    b_pad = _round_up(B, tile_b)
    if b_pad != B:
        x_flat = jnp.pad(x_flat, ((0, b_pad - B), (0, 0)))
    n_tiles = b_pad // tile_b

    # Split the 20-wide head weight so the kernel avoids a lane concat.
    w4a = params["w4"][:10]
    w4b = params["w4"][10:]

    if weight_sharing:
        kernel = fnn_shared_kernel
        operands = (x_flat,
                    params["w1a"], params["b1a"],
                    params["w2a"], params["b2a"],
                    params["w3a"], params["b3a"],
                    w4a, w4b, params["b4"])
    else:
        kernel = fnn_separate_kernel
        operands = (x_flat,
                    params["w1a"], params["b1a"],
                    params["w2a"], params["b2a"],
                    params["w3a"], params["b3a"],
                    params["w1b"], params["b1b"],
                    params["w2b"], params["b2b"],
                    params["w3b"], params["b3b"],
                    w4a, w4b, params["b4"])

    in_specs = [pl.BlockSpec((tile_b, 2 * IMG), lambda i: (i, 0))]
    for op in operands[1:]:
        # Weights/biases: full-extent resident blocks, same block every step.
        in_specs.append(pl.BlockSpec(op.shape, lambda i: (0, 0)))

    packed = pl.pallas_call(
        kernel,
        out_shape=jax.ShapeDtypeStruct((b_pad, out_w), jnp.float32),
        grid=(n_tiles,),
        in_specs=in_specs,
        out_specs=pl.BlockSpec((tile_b, out_w), lambda i: (i, 0)),
        compiler_params=pltpu.CompilerParams(
            dimension_semantics=("parallel",)),
    )(*operands)

    packed = packed[:B]
    y1 = packed[:, 0:10]
    y2 = packed[:, 10:20]
    y = packed[:, 20:]

    if auxiliary_loss:
        return y1, y2, y
    return y


def _reference(x, params, *, weight_sharing=True):
    """Pure-JAX reference for a correctness spot check."""
    B = x.shape[0]
    x1 = x[:, 0].reshape(B, IMG)
    x2 = x[:, 1].reshape(B, IMG)

    def branch(v, w1, b1, w2, b2, w3, b3):
        h = jax.nn.relu(v @ w1 + b1)
        h = jax.nn.relu(h @ w2 + b2)
        return jax.nn.softmax(h @ w3 + b3, axis=-1)

    y1 = branch(x1, params["w1a"], params["b1a"], params["w2a"], params["b2a"],
                params["w3a"], params["b3a"])
    if weight_sharing:
        y2 = branch(x2, params["w1a"], params["b1a"], params["w2a"],
                    params["b2a"], params["w3a"], params["b3a"])
    else:
        y2 = branch(x2, params["w1b"], params["b1b"], params["w2b"],
                    params["b2b"], params["w3b"], params["b3b"])
    y = jnp.concatenate([y1, y2], axis=-1) @ params["w4"] + params["b4"]
    return y1, y2, y


if __name__ == "__main__":
    key = jax.random.PRNGKey(0)
    k_param, k_x = jax.random.split(key)

    output_channels = 2
    params = init_params(k_param, output_channels)

    # Small input consistent with the module: (batch=2, 2 "digit" channels, 14x14)
    x = jax.random.normal(k_x, (2, 2, 14, 14), dtype=jnp.float32)

    for sharing in (True, False):
        y1, y2, y = fnn_forward(x, params, weight_sharing=sharing,
                                auxiliary_loss=True)
        jax.block_until_ready((y1, y2, y))
        assert y1.shape == (2, 10) and y2.shape == (2, 10)
        assert y.shape == (2, output_channels)

        r1, r2, r = _reference(x, params, weight_sharing=sharing)
        assert jnp.allclose(y1, r1, rtol=1e-2, atol=1e-2)
        assert jnp.allclose(y2, r2, rtol=1e-2, atol=1e-2)
        assert jnp.allclose(y, r, rtol=1e-2, atol=1e-2)

    print("KERNEL_OK")
</pallas_src>

<mosaic_0001>
module attributes {stable_mosaic.version = 11 : i64} {
  func.func @fnn_shared_kernel(%arg0: i32, %arg1: memref<8x392xf32, #tpu.memory_space<vmem>>, %arg2: memref<196x128xf32, #tpu.memory_space<vmem>>, %arg3: memref<1x128xf32, #tpu.memory_space<vmem>>, %arg4: memref<128x64xf32, #tpu.memory_space<vmem>>, %arg5: memref<1x64xf32, #tpu.memory_space<vmem>>, %arg6: memref<64x10xf32, #tpu.memory_space<vmem>>, %arg7: memref<1x10xf32, #tpu.memory_space<vmem>>, %arg8: memref<10x2xf32, #tpu.memory_space<vmem>>, %arg9: memref<10x2xf32, #tpu.memory_space<vmem>>, %arg10: memref<1x2xf32, #tpu.memory_space<vmem>>, %arg11: memref<8x22xf32, #tpu.memory_space<vmem>>) attributes {dimension_semantics = [#tpu.dimension_semantics<parallel>], iteration_bounds = array<i64: 1>, scalar_prefetch = 0 : i64, scratch_operands = 0 : i64, tpu.core_type = #tpu.core_type<tc>, window_params = [{transform_indices = @transform_0, window_bounds = array<i64: 8, 392>}, {pipeline_mode = #tpu.pipeline_mode<synchronous>, transform_indices = @transform_1, window_bounds = array<i64: 196, 128>}, {pipeline_mode = #tpu.pipeline_mode<synchronous>, transform_indices = @transform_2, window_bounds = array<i64: 1, 128>}, {pipeline_mode = #tpu.pipeline_mode<synchronous>, transform_indices = @transform_3, window_bounds = array<i64: 128, 64>}, {pipeline_mode = #tpu.pipeline_mode<synchronous>, transform_indices = @transform_4, window_bounds = array<i64: 1, 64>}, {pipeline_mode = #tpu.pipeline_mode<synchronous>, transform_indices = @transform_5, window_bounds = array<i64: 64, 10>}, {pipeline_mode = #tpu.pipeline_mode<synchronous>, transform_indices = @transform_6, window_bounds = array<i64: 1, 10>}, {pipeline_mode = #tpu.pipeline_mode<synchronous>, transform_indices = @transform_7, window_bounds = array<i64: 10, 2>}, {pipeline_mode = #tpu.pipeline_mode<synchronous>, transform_indices = @transform_8, window_bounds = array<i64: 10, 2>}, {pipeline_mode = #tpu.pipeline_mode<synchronous>, transform_indices = @transform_9, window_bounds = array<i64: 1, 2>}, {transform_indices = @transform_10, window_bounds = array<i64: 8, 22>}]} {
    %c0 = arith.constant 0 : index
    %c0_0 = arith.constant 0 : index
    %0 = vector.load %arg1[%c0, %c0_0] : memref<8x392xf32, #tpu.memory_space<vmem>>, vector<8x196xf32>
    %c0_1 = arith.constant 0 : index
    %c196 = arith.constant 196 : index
    %1 = vector.load %arg1[%c0_1, %c196] : memref<8x392xf32, #tpu.memory_space<vmem>>, vector<8x196xf32>
    %2 = tpu.concatenate %0, %1 in 0 : vector<8x196xf32>, vector<8x196xf32> -> vector<16x196xf32>
    %c0_2 = arith.constant 0 : index
    %c0_3 = arith.constant 0 : index
    %3 = vector.load %arg2[%c0_2, %c0_3] : memref<196x128xf32, #tpu.memory_space<vmem>>, vector<196x128xf32>
    %c0_4 = arith.constant 0 : index
    %c0_5 = arith.constant 0 : index
    %4 = vector.load %arg3[%c0_4, %c0_5] : memref<1x128xf32, #tpu.memory_space<vmem>>, vector<1x128xf32>
    %c0_6 = arith.constant 0 : index
    %c0_7 = arith.constant 0 : index
    %5 = vector.load %arg4[%c0_6, %c0_7] : memref<128x64xf32, #tpu.memory_space<vmem>>, vector<128x64xf32>
    %c0_8 = arith.constant 0 : index
    %c0_9 = arith.constant 0 : index
    %6 = vector.load %arg5[%c0_8, %c0_9] : memref<1x64xf32, #tpu.memory_space<vmem>>, vector<1x64xf32>
    %c0_10 = arith.constant 0 : index
    %c0_11 = arith.constant 0 : index
    %7 = vector.load %arg6[%c0_10, %c0_11] : memref<64x10xf32, #tpu.memory_space<vmem>>, vector<64x10xf32>
    %c0_12 = arith.constant 0 : index
    %c0_13 = arith.constant 0 : index
    %8 = vector.load %arg7[%c0_12, %c0_13] : memref<1x10xf32, #tpu.memory_space<vmem>>, vector<1x10xf32>
    %cst = arith.constant dense<0.000000e+00> : vector<16x128xf32>
    %9 = tpu.matmul %2, %3, %cst {dimension_numbers = #tpu.dot_dimension_numbers<[1], [0], [0], [1], [0, 0, 1, 1], [], []>} : vector<16x196xf32>, vector<196x128xf32>, vector<16x128xf32> -> vector<16x128xf32>
    %10 = vector.broadcast %4 : vector<1x128xf32> to vector<16x128xf32>
    %11 = arith.addf %9, %10 : vector<16x128xf32>
    %cst_14 = arith.constant 0.000000e+00 : f32
    %12 = vector.broadcast %cst_14 : f32 to vector<16x128xf32>
    %13 = arith.maximumf %11, %12 : vector<16x128xf32>
    %cst_15 = arith.constant dense<0.000000e+00> : vector<16x64xf32>
    %14 = tpu.matmul %13, %5, %cst_15 {dimension_numbers = #tpu.dot_dimension_numbers<[1], [0], [0], [1], [0, 0, 1, 1], [], []>} : vector<16x128xf32>, vector<128x64xf32>, vector<16x64xf32> -> vector<16x64xf32>
    %15 = vector.broadcast %6 : vector<1x64xf32> to vector<16x64xf32>
    %16 = arith.addf %14, %15 : vector<16x64xf32>
    %cst_16 = arith.constant 0.000000e+00 : f32
    %17 = vector.broadcast %cst_16 : f32 to vector<16x64xf32>
    %18 = arith.maximumf %16, %17 : vector<16x64xf32>
    %cst_17 = arith.constant dense<0.000000e+00> : vector<16x10xf32>
    %19 = tpu.matmul %18, %7, %cst_17 {dimension_numbers = #tpu.dot_dimension_numbers<[1], [0], [0], [1], [0, 0, 1, 1], [], []>} : vector<16x64xf32>, vector<64x10xf32>, vector<16x10xf32> -> vector<16x10xf32>
    %20 = vector.broadcast %8 : vector<1x10xf32> to vector<16x10xf32>
    %21 = arith.addf %19, %20 : vector<16x10xf32>
    %cst_18 = arith.constant dense<0xFF800000> : vector<16xf32>
    %22 = vector.multi_reduction <maximumf>, %21, %cst_18 [1] : vector<16x10xf32> to vector<16xf32>
    %23 = vector.shape_cast %22 : vector<16xf32> to vector<16x1xf32>
    %24 = vector.broadcast %23 : vector<16x1xf32> to vector<16x10xf32>
    %25 = arith.subf %21, %24 : vector<16x10xf32>
    %26 = math.exp %25 : vector<16x10xf32>
    %cst_19 = arith.constant dense<0.000000e+00> : vector<16xf32>
    %27 = vector.multi_reduction <add>, %26, %cst_19 [1] : vector<16x10xf32> to vector<16xf32>
    %28 = vector.shape_cast %27 : vector<16xf32> to vector<16x1xf32>
    %29 = tpu.reciprocal %28 {approx = true} : vector<16x1xf32> -> vector<16x1xf32>
    %30 = vector.broadcast %29 : vector<16x1xf32> to vector<16x10xf32>
    %31 = arith.mulf %26, %30 : vector<16x10xf32>
    %32 = vector.extract_strided_slice %31 {offsets = [0, 0], sizes = [8, 10], strides = [1, 1]} : vector<16x10xf32> to vector<8x10xf32>
    %33 = vector.extract_strided_slice %31 {offsets = [8, 0], sizes = [8, 10], strides = [1, 1]} : vector<16x10xf32> to vector<8x10xf32>
    %c0_20 = arith.constant 0 : index
    %c0_21 = arith.constant 0 : index
    %34 = vector.load %arg8[%c0_20, %c0_21] : memref<10x2xf32, #tpu.memory_space<vmem>>, vector<10x2xf32>
    %cst_22 = arith.constant dense<0.000000e+00> : vector<8x2xf32>
    %35 = tpu.matmul %32, %34, %cst_22 {dimension_numbers = #tpu.dot_dimension_numbers<[1], [0], [0], [1], [0, 0, 1, 1], [], []>} : vector<8x10xf32>, vector<10x2xf32>, vector<8x2xf32> -> vector<8x2xf32>
    %c0_23 = arith.constant 0 : index
    %c0_24 = arith.constant 0 : index
    %36 = vector.load %arg9[%c0_23, %c0_24] : memref<10x2xf32, #tpu.memory_space<vmem>>, vector<10x2xf32>
    %cst_25 = arith.constant dense<0.000000e+00> : vector<8x2xf32>
    %37 = tpu.matmul %33, %36, %cst_25 {dimension_numbers = #tpu.dot_dimension_numbers<[1], [0], [0], [1], [0, 0, 1, 1], [], []>} : vector<8x10xf32>, vector<10x2xf32>, vector<8x2xf32> -> vector<8x2xf32>
    %38 = arith.addf %35, %37 : vector<8x2xf32>
    %c0_26 = arith.constant 0 : index
    %c0_27 = arith.constant 0 : index
    %39 = vector.load %arg10[%c0_26, %c0_27] : memref<1x2xf32, #tpu.memory_space<vmem>>, vector<1x2xf32>
    %40 = vector.broadcast %39 : vector<1x2xf32> to vector<8x2xf32>
    %41 = arith.addf %38, %40 : vector<8x2xf32>
    %c0_28 = arith.constant 0 : index
    %c0_29 = arith.constant 0 : index
    %42 = vector.load %arg11[%c0_28, %c0_29] : memref<8x22xf32, #tpu.memory_space<vmem>>, vector<8x10xf32>
    tpu.vector_store %arg11[%c0_28, %c0_29], %32 {strides = array<i32>} : memref<8x22xf32, #tpu.memory_space<vmem>>, vector<8x10xf32>,
    %c0_30 = arith.constant 0 : index
    %c10 = arith.constant 10 : index
    %43 = vector.load %arg11[%c0_30, %c10] : memref<8x22xf32, #tpu.memory_space<vmem>>, vector<8x10xf32>
    tpu.vector_store %arg11[%c0_30, %c10], %33 {strides = array<i32>} : memref<8x22xf32, #tpu.memory_space<vmem>>, vector<8x10xf32>,
    %c0_31 = arith.constant 0 : index
    %c20 = arith.constant 20 : index
    %44 = vector.load %arg11[%c0_31, %c20] : memref<8x22xf32, #tpu.memory_space<vmem>>, vector<8x2xf32>
    tpu.vector_store %arg11[%c0_31, %c20], %41 {strides = array<i32>} : memref<8x22xf32, #tpu.memory_space<vmem>>, vector<8x2xf32>,
    return
  }
  func.func @transform_0(%arg0: i32) -> (i32, i32) {
    %c0_i32 = arith.constant 0 : i32
    %c0_i32_0 = arith.constant 0 : i32
    return %arg0, %c0_i32 : i32, i32
  }
  func.func @transform_1(%arg0: i32) -> (i32, i32) {
    %c0_i32 = arith.constant 0 : i32
    %c0_i32_0 = arith.constant 0 : i32
    %c0_i32_1 = arith.constant 0 : i32
    return %c0_i32, %c0_i32_0 : i32, i32
  }
  func.func @transform_2(%arg0: i32) -> (i32, i32) {
    %c0_i32 = arith.constant 0 : i32
    %c0_i32_0 = arith.constant 0 : i32
    %c0_i32_1 = arith.constant 0 : i32
    return %c0_i32, %c0_i32_0 : i32, i32
  }
  func.func @transform_3(%arg0: i32) -> (i32, i32) {
    %c0_i32 = arith.constant 0 : i32
    %c0_i32_0 = arith.constant 0 : i32
    %c0_i32_1 = arith.constant 0 : i32
    return %c0_i32, %c0_i32_0 : i32, i32
  }
  func.func @transform_4(%arg0: i32) -> (i32, i32) {
    %c0_i32 = arith.constant 0 : i32
    %c0_i32_0 = arith.constant 0 : i32
    %c0_i32_1 = arith.constant 0 : i32
    return %c0_i32, %c0_i32_0 : i32, i32
  }
  func.func @transform_5(%arg0: i32) -> (i32, i32) {
    %c0_i32 = arith.constant 0 : i32
    %c0_i32_0 = arith.constant 0 : i32
    %c0_i32_1 = arith.constant 0 : i32
    return %c0_i32, %c0_i32_0 : i32, i32
  }
  func.func @transform_6(%arg0: i32) -> (i32, i32) {
    %c0_i32 = arith.constant 0 : i32
    %c0_i32_0 = arith.constant 0 : i32
    %c0_i32_1 = arith.constant 0 : i32
    return %c0_i32, %c0_i32_0 : i32, i32
  }
  func.func @transform_7(%arg0: i32) -> (i32, i32) {
    %c0_i32 = arith.constant 0 : i32
    %c0_i32_0 = arith.constant 0 : i32
    %c0_i32_1 = arith.constant 0 : i32
    return %c0_i32, %c0_i32_0 : i32, i32
  }
  func.func @transform_8(%arg0: i32) -> (i32, i32) {
    %c0_i32 = arith.constant 0 : i32
    %c0_i32_0 = arith.constant 0 : i32
    %c0_i32_1 = arith.constant 0 : i32
    return %c0_i32, %c0_i32_0 : i32, i32
  }
  func.func @transform_9(%arg0: i32) -> (i32, i32) {
    %c0_i32 = arith.constant 0 : i32
    %c0_i32_0 = arith.constant 0 : i32
    %c0_i32_1 = arith.constant 0 : i32
    return %c0_i32, %c0_i32_0 : i32, i32
  }
  func.func @transform_10(%arg0: i32) -> (i32, i32) {
    %c0_i32 = arith.constant 0 : i32
    %c0_i32_0 = arith.constant 0 : i32
    return %arg0, %c0_i32 : i32, i32
  }
}

</mosaic_0001>

<llo_original>
// kernel: fnn_forward.1
$region0: #{fnn_forward.1}
  #allocation0 [shape = 'u32[]', space=smem, size = 0x4, offset = 0x4, fixed_abs, tag = 'smem constant byte address 0x4 - core index']
  #allocation1 [shape = 'u32[144,128]{1,0:T(1,128)}', space=vmem, size = 0x12000, scoped, tag = 'internal scratch']
  %s0 = inlined_call_operand.vmem [shape: f32[8,392], index: 0, kind: input, shape index: {}]
  %s1 = inlined_call_operand.vmem [shape: f32[196,128], index: 1, kind: input, shape index: {}]
  %s2 = inlined_call_operand.vmem [shape: f32[1,128], index: 2, kind: input, shape index: {}]
  %s3 = inlined_call_operand.vmem [shape: f32[128,64], index: 3, kind: input, shape index: {}]
  %s4 = inlined_call_operand.vmem [shape: f32[1,64], index: 4, kind: input, shape index: {}]
  %s5 = inlined_call_operand.vmem [shape: f32[64,10], index: 5, kind: input, shape index: {}]
  %s6 = inlined_call_operand.vmem [shape: f32[1,10], index: 6, kind: input, shape index: {}]
  %s7 = inlined_call_operand.vmem [shape: f32[10,2], index: 7, kind: input, shape index: {}]
  %s8 = inlined_call_operand.vmem [shape: f32[10,2], index: 8, kind: input, shape index: {}]
  %s9 = inlined_call_operand.vmem [shape: f32[1,2], index: 9, kind: input, shape index: {}]
  %s10 = inlined_call_operand.vmem [shape: f32[8,22], index: 10, kind: output, shape index: {}]
  %s11 = sld [smem:[#allocation0]]
  $region50: #{fnn_forward.1} parent=0
    _
  %s13 = ssub.s32 1, %s11
  %s14 = scalar_select 0, %s13, %s11
  // Predicated region
  $region2: #{fnn_forward.1} parent=0 // pred_check
    _
  $region3: #{fnn_forward.1} parent=0 // pred_check_branch
    %16 = sbr.rel (0) target = $region5
  $region4: #{fnn_forward.1} parent=0 // pred_region
    _
  $region5: #{fnn_forward.1} parent=0 // pred_fallthru
    _
  // Predicated region
  $region6: #{fnn_forward.1} parent=0 // pred_check
    _
  $region7: #{fnn_forward.1} parent=0 // pred_check_branch
    %18 = sbr.rel (0) target = $region9
  $region8: #{fnn_forward.1} parent=0 // pred_region
    _
  $region9: #{fnn_forward.1} parent=0 // pred_fallthru
    _
  // Predicated region
  $region10: #{fnn_forward.1} parent=0 // pred_check
    _
  $region11: #{fnn_forward.1} parent=0 // pred_check_branch
    %20 = sbr.rel (0) target = $region13
  $region12: #{fnn_forward.1} parent=0 // pred_region
    _
  $region13: #{fnn_forward.1} parent=0 // pred_fallthru
    _
  // Predicated region
  $region14: #{fnn_forward.1} parent=0 // pred_check
    _
  $region15: #{fnn_forward.1} parent=0 // pred_check_branch
    %22 = sbr.rel (0) target = $region17
  $region16: #{fnn_forward.1} parent=0 // pred_region
    _
  $region17: #{fnn_forward.1} parent=0 // pred_fallthru
    _
  // Predicated region
  $region18: #{fnn_forward.1} parent=0 // pred_check
    _
  $region19: #{fnn_forward.1} parent=0 // pred_check_branch
    %24 = sbr.rel (0) target = $region21
  $region20: #{fnn_forward.1} parent=0 // pred_region
    _
  $region21: #{fnn_forward.1} parent=0 // pred_fallthru
    _
  // Predicated region
  $region22: #{fnn_forward.1} parent=0 // pred_check
    _
  $region23: #{fnn_forward.1} parent=0 // pred_check_branch
    %26 = sbr.rel (0) target = $region25
  $region24: #{fnn_forward.1} parent=0 // pred_region
    _
  $region25: #{fnn_forward.1} parent=0 // pred_fallthru
    _
  // Predicated region
  $region26: #{fnn_forward.1} parent=0 // pred_check
    _
  $region27: #{fnn_forward.1} parent=0 // pred_check_branch
    %28 = sbr.rel (0) target = $region29
  $region28: #{fnn_forward.1} parent=0 // pred_region
    _
  $region29: #{fnn_forward.1} parent=0 // pred_fallthru
    _
  // Predicated region
  $region30: #{fnn_forward.1} parent=0 // pred_check
    _
  $region31: #{fnn_forward.1} parent=0 // pred_check_branch
    %30 = sbr.rel (0) target = $region33
  $region32: #{fnn_forward.1} parent=0 // pred_region
    _
  $region33: #{fnn_forward.1} parent=0 // pred_fallthru
    _
  // Predicated region
  $region34: #{fnn_forward.1} parent=0 // pred_check
    _
  $region35: #{fnn_forward.1} parent=0 // pred_check_branch
    %32 = sbr.rel (0) target = $region37
  $region36: #{fnn_forward.1} parent=0 // pred_region
    _
  $region37: #{fnn_forward.1} parent=0 // pred_fallthru
    _
  // Predicated region
  $region38: #{fnn_forward.1} parent=0 // pred_check
    _
  $region39: #{fnn_forward.1} parent=0 // pred_check_branch
    %34 = sbr.rel (0) target = $region41
  $region40: #{fnn_forward.1} parent=0 // pred_region
    _
  $region41: #{fnn_forward.1} parent=0 // pred_fallthru
    _
  %v35 = vld [vmem:[%s0] sm:$0xff]
  %v36 = vld [vmem:[%s0 + $0x8] sm:$0xff]
  %v37 = vld [vmem:[%s0 + $0x10] sm:$0xff]
  %v38 = vld [vmem:[%s0 + $0x18] sm:$0xff]
  %42 = vrot.lane.b32.xlu0 %v36, 60
  %v43 = vpop.permute.xlu0 %42
  %44 = vrot.lane.b32.xlu0 %v37, 60
  %v45 = vpop.permute.xlu0 %44
  %46 = vrot.lane.b32.xlu0 %v38, 60
  %v47 = vpop.permute.xlu0 %46
  %vm48 = vcmask 490496
  %v49 = vsel %vm48, %v43, %v45
  %v50 = vsel %vm48, %v45, %v47
  %v52 = vld [vmem:[%s1] sm:$0xff]
  %v53 = vld [vmem:[%s1 + $0x8] sm:$0xff]
  %v54 = vld [vmem:[%s1 + $0x10] sm:$0xff]
  %v55 = vld [vmem:[%s1 + $0x18] sm:$0xff]
  %v56 = vld [vmem:[%s1 + $0x20] sm:$0xff]
  %v57 = vld [vmem:[%s1 + $0x28] sm:$0xff]
  %v58 = vld [vmem:[%s1 + $0x30] sm:$0xff]
  %v59 = vld [vmem:[%s1 + $0x38] sm:$0xff]
  %v60 = vld [vmem:[%s1 + $0x40] sm:$0xff]
  %v61 = vld [vmem:[%s1 + $0x48] sm:$0xff]
  %v62 = vld [vmem:[%s1 + $0x50] sm:$0xff]
  %v63 = vld [vmem:[%s1 + $0x58] sm:$0xff]
  %v64 = vld [vmem:[%s1 + $0x60] sm:$0xff]
  %v65 = vld [vmem:[%s1 + $0x68] sm:$0xff]
  %v66 = vld [vmem:[%s1 + $0x70] sm:$0xff]
  %v67 = vld [vmem:[%s1 + $0x78] sm:$0xff]
  %v68 = vld [vmem:[%s1 + $0x80] sm:$0xff]
  %v69 = vld [vmem:[%s1 + $0x88] sm:$0xff]
  %v70 = vld [vmem:[%s1 + $0x90] sm:$0xff]
  %v71 = vld [vmem:[%s1 + $0x98] sm:$0xff]
  %v72 = vld [vmem:[%s1 + $0xa0] sm:$0xff]
  %v73 = vld [vmem:[%s1 + $0xa8] sm:$0xff]
  %v74 = vld [vmem:[%s1 + $0xb0] sm:$0xff]
  %v75 = vld [vmem:[%s1 + $0xb8] sm:$0xff]
  %v76 = vld [vmem:[%s1 + $0xc0] sm:$0xf]
  %v77 = vld [vmem:[%s2] sm:$0x1]
  %v78 = vld [vmem:[%s3] sm:$0xff]
  %v79 = vld [vmem:[%s3 + $0x8] sm:$0xff]
  %v80 = vld [vmem:[%s3 + $0x10] sm:$0xff]
  %v81 = vld [vmem:[%s3 + $0x18] sm:$0xff]
  %v82 = vld [vmem:[%s3 + $0x20] sm:$0xff]
  %v83 = vld [vmem:[%s3 + $0x28] sm:$0xff]
  %v84 = vld [vmem:[%s3 + $0x30] sm:$0xff]
  %v85 = vld [vmem:[%s3 + $0x38] sm:$0xff]
  %v86 = vld [vmem:[%s3 + $0x40] sm:$0xff]
  %v87 = vld [vmem:[%s3 + $0x48] sm:$0xff]
  %v88 = vld [vmem:[%s3 + $0x50] sm:$0xff]
  %v89 = vld [vmem:[%s3 + $0x58] sm:$0xff]
  %v90 = vld [vmem:[%s3 + $0x60] sm:$0xff]
  %v91 = vld [vmem:[%s3 + $0x68] sm:$0xff]
  %v92 = vld [vmem:[%s3 + $0x70] sm:$0xff]
  %v93 = vld [vmem:[%s3 + $0x78] sm:$0xff]
  %v94 = vld [vmem:[%s4] sm:$0x1]
  %v95 = vld [vmem:[%s5] sm:$0xff]
  %v96 = vld [vmem:[%s5 + $0x8] sm:$0xff]
  %v97 = vld [vmem:[%s5 + $0x10] sm:$0xff]
  %v98 = vld [vmem:[%s5 + $0x18] sm:$0xff]
  %v99 = vld [vmem:[%s5 + $0x20] sm:$0xff]
  %v100 = vld [vmem:[%s5 + $0x28] sm:$0xff]
  %v101 = vld [vmem:[%s5 + $0x30] sm:$0xff]
  %v102 = vld [vmem:[%s5 + $0x38] sm:$0xff]
  %v103 = vld [vmem:[%s6] sm:$0x1]
  %v105 = vlaneseq
  %v106 = vshrl.u32 %v105, 7
  %v107 = vsub.s32 0, %v106
  %v108 = vrot.slane %v77, %v107
  %vm110 = vcmask 556032
  %v111 = vsel %vm110, %v36, 0
  %v113 = vsel %vm110, %v50, 0
  %vm115 = vcmask 1043456
  %v117 = vsel %vm115, %v76, 0
  %119 = vmatprep.subr.mxu0 0.0
  %120 = vmatpush1.msra.mxu0 %v67
  %121 = vmatprep.subr.mxu0 0.0
  %122 = vmatpush1.msra.mxu0 %v66
  %123 = vmatprep.subr.mxu0 0.0
  %124 = vmatpush1.msra.mxu0 %v65
  %125 = vmatprep.subr.mxu0 0.0
  %126 = vmatpush1.msra.mxu0 %v64
  %127 = vmatprep.subr.mxu0 0.0
  %128 = vmatpush1.msra.mxu0 %v63
  %129 = vmatprep.subr.mxu0 0.0
  %130 = vmatpush1.msra.mxu0 %v62
  %131 = vmatprep.subr.mxu0 0.0
  %132 = vmatpush1.msra.mxu0 %v61
  %133 = vmatprep.subr.mxu0 0.0
  %134 = vmatpush1.msra.mxu0 %v60
  %135 = vmatprep.subr.mxu0 0.0
  %136 = vmatpush1.msra.mxu0 %v59
  %137 = vmatprep.subr.mxu0 0.0
  %138 = vmatpush1.msra.mxu0 %v58
  %139 = vmatprep.subr.mxu0 0.0
  %140 = vmatpush1.msra.mxu0 %v57
  %141 = vmatprep.subr.mxu0 0.0
  %142 = vmatpush1.msra.mxu0 %v56
  %143 = vmatprep.subr.mxu0 0.0
  %144 = vmatpush1.msra.mxu0 %v55
  %145 = vmatprep.subr.mxu0 0.0
  %146 = vmatpush1.msra.mxu0 %v54
  %147 = vmatprep.subr.mxu0 0.0
  %148 = vmatpush1.msra.mxu0 %v53
  %149 = vmatprep.subr.mxu0 0.0
  %150 = vmatpush1.msra.mxu0 %v52
  %151 = vmatprep.subr.mxu0 0.0
  %152 = vmatpush2.msra.mxu0 0.0
  %153 = vmatprep.subr.mxu0 0.0
  %154 = vmatpush2.msra.mxu0 0.0
  %155 = vmatprep.subr.mxu0 0.0
  %156 = vmatpush2.msra.mxu0 0.0
  %157 = vmatprep.subr.mxu0 0.0
  %158 = vmatpush2.msra.mxu0 0.0
  %159 = vmatprep.subr.mxu0 0.0
  %160 = vmatpush2.msra.mxu0 0.0
  %161 = vmatprep.subr.mxu0 0.0
  %162 = vmatpush2.msra.mxu0 0.0
  %163 = vmatprep.subr.mxu0 0.0
  %164 = vmatpush2.msra.mxu0 0.0
  %165 = vmatprep.subr.mxu0 0.0
  %166 = vmatpush2.msra.mxu0 %v117
  %167 = vmatprep.subr.mxu0 0.0
  %168 = vmatpush2.msra.mxu0 %v75
  %169 = vmatprep.subr.mxu0 0.0
  %170 = vmatpush2.msra.mxu0 %v74
  %171 = vmatprep.subr.mxu0 0.0
  %172 = vmatpush2.msra.mxu0 %v73
  %173 = vmatprep.subr.mxu0 0.0
  %174 = vmatpush2.msra.mxu0 %v72
  %175 = vmatprep.subr.mxu0 0.0
  %176 = vmatpush2.msra.mxu0 %v71
  %177 = vmatprep.subr.mxu0 0.0
  %178 = vmatpush2.msra.mxu0 %v70
  %179 = vmatprep.subr.mxu0 0.0
  %180 = vmatpush2.msra.mxu0 %v69
  %181 = vmatprep.subr.mxu0 0.0
  %182 = vmatpush2.msra.mxu0 %v68
  %183 = vmatprep.mubr.f32.mxu0 %v111
  %184 = vmatmul.mubr.f32.gmra.mxu0 %v35
  %v185 = vpop.f32.mrf.mxu0
  %v186 = vadd.f32 %v108, %v185
  %v187 = vpop.f32.mrf.mxu0
  %188 = vmatprep.mubr.f32.mxu0 %v113
  %189 = vmatmul.mubr.f32.gmra.mxu0 %v49
  %v190 = vpop.f32.mrf.mxu0
  %v191 = vadd.f32 %v108, %v190
  %v192 = vpop.f32.mrf.mxu0
  %193 = vdwg.mxu0
  %v194 = vmax.f32 %v186, 0.0
  %v195 = vmax.f32 %v191, 0.0
  %v197 = vlaneseq
  %v198 = vshrl.u32 %v197, 7
  %v199 = vsub.s32 0, %v198
  %v200 = vrot.slane %v94, %v199
  %202 = vmatprep.subr.mxu0 0.0
  %203 = vmatpush1.msra.mxu0 %v93
  %204 = vmatprep.subr.mxu0 0.0
  %205 = vmatpush1.msra.mxu0 %v92
  %206 = vmatprep.subr.mxu0 0.0
  %207 = vmatpush1.msra.mxu0 %v91
  %208 = vmatprep.subr.mxu0 0.0
  %209 = vmatpush1.msra.mxu0 %v90
  %210 = vmatprep.subr.mxu0 0.0
  %211 = vmatpush1.msra.mxu0 %v89
  %212 = vmatprep.subr.mxu0 0.0
  %213 = vmatpush1.msra.mxu0 %v88
  %214 = vmatprep.subr.mxu0 0.0
  %215 = vmatpush1.msra.mxu0 %v87
  %216 = vmatprep.subr.mxu0 0.0
  %217 = vmatpush1.msra.mxu0 %v86
  %218 = vmatprep.subr.mxu0 0.0
  %219 = vmatpush1.msra.mxu0 %v85
  %220 = vmatprep.subr.mxu0 0.0
  %221 = vmatpush1.msra.mxu0 %v84
  %222 = vmatprep.subr.mxu0 0.0
  %223 = vmatpush1.msra.mxu0 %v83
  %224 = vmatprep.subr.mxu0 0.0
  %225 = vmatpush1.msra.mxu0 %v82
  %226 = vmatprep.subr.mxu0 0.0
  %227 = vmatpush1.msra.mxu0 %v81
  %228 = vmatprep.subr.mxu0 0.0
  %229 = vmatpush1.msra.mxu0 %v80
  %230 = vmatprep.subr.mxu0 0.0
  %231 = vmatpush1.msra.mxu0 %v79
  %232 = vmatprep.subr.mxu0 0.0
  %233 = vmatpush1.msra.mxu0 %v78
  %234 = vmatprep.subr.mxu0 0.0
  %235 = vmatpush2.msra.mxu0 0.0
  %236 = vmatprep.subr.mxu0 0.0
  %237 = vmatpush2.msra.mxu0 0.0
  %238 = vmatprep.subr.mxu0 0.0
  %239 = vmatpush2.msra.mxu0 0.0
  %240 = vmatprep.subr.mxu0 0.0
  %241 = vmatpush2.msra.mxu0 0.0
  %242 = vmatprep.subr.mxu0 0.0
  %243 = vmatpush2.msra.mxu0 0.0
  %244 = vmatprep.subr.mxu0 0.0
  %245 = vmatpush2.msra.mxu0 0.0
  %246 = vmatprep.subr.mxu0 0.0
  %247 = vmatpush2.msra.mxu0 0.0
  %248 = vmatprep.subr.mxu0 0.0
  %249 = vmatpush2.msra.mxu0 0.0
  %250 = vmatprep.subr.mxu0 0.0
  %251 = vmatpush2.msra.mxu0 0.0
  %252 = vmatprep.subr.mxu0 0.0
  %253 = vmatpush2.msra.mxu0 0.0
  %254 = vmatprep.subr.mxu0 0.0
  %255 = vmatpush2.msra.mxu0 0.0
  %256 = vmatprep.subr.mxu0 0.0
  %257 = vmatpush2.msra.mxu0 0.0
  %258 = vmatprep.subr.mxu0 0.0
  %259 = vmatpush2.msra.mxu0 0.0
  %260 = vmatprep.subr.mxu0 0.0
  %261 = vmatpush2.msra.mxu0 0.0
  %262 = vmatprep.subr.mxu0 0.0
  %263 = vmatpush2.msra.mxu0 0.0
  %264 = vmatprep.subr.mxu0 0.0
  %265 = vmatpush2.msra.mxu0 0.0
  %266 = vmatprep.mubr.f32.mxu0 0.0
  %267 = vmatmul.mubr.f32.gmra.mxu0 %v194
  %v268 = vpop.f32.mrf.mxu0
  %v269 = vadd.f32 %v200, %v268
  %v270 = vpop.f32.mrf.mxu0
  %271 = vmatprep.mubr.f32.mxu0 0.0
  %272 = vmatmul.mubr.f32.gmra.mxu0 %v195
  %v273 = vpop.f32.mrf.mxu0
  %v274 = vadd.f32 %v200, %v273
  %v275 = vpop.f32.mrf.mxu0
  %276 = vdwg.mxu0
  %v277 = vmax.f32 %v269, 0.0
  %v278 = vmax.f32 %v274, 0.0
  %v280 = vlaneseq
  %v281 = vshrl.u32 %v280, 7
  %v282 = vsub.s32 0, %v281
  %v283 = vrot.slane %v103, %v282
  %vm285 = vcmask 523264
  %v287 = vsel %vm285, %v277, 0
  %v290 = vsel %vm285, %v278, 0
  %292 = vmatprep.subr.mxu0 0.0
  %293 = vmatpush1.msra.mxu0 0.0
  %294 = vmatprep.subr.mxu0 0.0
  %295 = vmatpush1.msra.mxu0 0.0
  %296 = vmatprep.subr.mxu0 0.0
  %297 = vmatpush1.msra.mxu0 0.0
  %298 = vmatprep.subr.mxu0 0.0
  %299 = vmatpush1.msra.mxu0 0.0
  %300 = vmatprep.subr.mxu0 0.0
  %301 = vmatpush1.msra.mxu0 0.0
  %302 = vmatprep.subr.mxu0 0.0
  %303 = vmatpush1.msra.mxu0 0.0
  %304 = vmatprep.subr.mxu0 0.0
  %305 = vmatpush1.msra.mxu0 0.0
  %306 = vmatprep.subr.mxu0 0.0
  %307 = vmatpush1.msra.mxu0 0.0
  %308 = vmatprep.subr.mxu0 0.0
  %309 = vmatpush1.msra.mxu0 %v102
  %310 = vmatprep.subr.mxu0 0.0
  %311 = vmatpush1.msra.mxu0 %v101
  %312 = vmatprep.subr.mxu0 0.0
  %313 = vmatpush1.msra.mxu0 %v100
  %314 = vmatprep.subr.mxu0 0.0
  %315 = vmatpush1.msra.mxu0 %v99
  %316 = vmatprep.subr.mxu0 0.0
  %317 = vmatpush1.msra.mxu0 %v98
  %318 = vmatprep.subr.mxu0 0.0
  %319 = vmatpush1.msra.mxu0 %v97
  %320 = vmatprep.subr.mxu0 0.0
  %321 = vmatpush1.msra.mxu0 %v96
  %322 = vmatprep.subr.mxu0 0.0
  %323 = vmatpush1.msra.mxu0 %v95
  %324 = vmatprep.subr.mxu0 0.0
  %325 = vmatpush2.msra.mxu0 0.0
  %326 = vmatprep.subr.mxu0 0.0
  %327 = vmatpush2.msra.mxu0 0.0
  %328 = vmatprep.subr.mxu0 0.0
  %329 = vmatpush2.msra.mxu0 0.0
  %330 = vmatprep.subr.mxu0 0.0
  %331 = vmatpush2.msra.mxu0 0.0
  %332 = vmatprep.subr.mxu0 0.0
  %333 = vmatpush2.msra.mxu0 0.0
  %334 = vmatprep.subr.mxu0 0.0
  %335 = vmatpush2.msra.mxu0 0.0
  %336 = vmatprep.subr.mxu0 0.0
  %337 = vmatpush2.msra.mxu0 0.0
  %338 = vmatprep.subr.mxu0 0.0
  %339 = vmatpush2.msra.mxu0 0.0
  %340 = vmatprep.subr.mxu0 0.0
  %341 = vmatpush2.msra.mxu0 0.0
  %342 = vmatprep.subr.mxu0 0.0
  %343 = vmatpush2.msra.mxu0 0.0
  %344 = vmatprep.subr.mxu0 0.0
  %345 = vmatpush2.msra.mxu0 0.0
  %346 = vmatprep.subr.mxu0 0.0
  %347 = vmatpush2.msra.mxu0 0.0
  %348 = vmatprep.subr.mxu0 0.0
  %349 = vmatpush2.msra.mxu0 0.0
  %350 = vmatprep.subr.mxu0 0.0
  %351 = vmatpush2.msra.mxu0 0.0
  %352 = vmatprep.subr.mxu0 0.0
  %353 = vmatpush2.msra.mxu0 0.0
  %354 = vmatprep.subr.mxu0 0.0
  %355 = vmatpush2.msra.mxu0 0.0
  %356 = vmatprep.mubr.f32.mxu0 0.0
  %357 = vmatmul.mubr.f32.gmra.mxu0 %v287
  %v358 = vpop.f32.mrf.mxu0
  %v359 = vadd.f32 %v283, %v358
  %v360 = vpop.f32.mrf.mxu0
  %361 = vmatprep.mubr.f32.mxu0 0.0
  %362 = vmatmul.mubr.f32.gmra.mxu0 %v290
  %v363 = vpop.f32.mrf.mxu0
  %v364 = vadd.f32 %v283, %v363
  %v365 = vpop.f32.mrf.mxu0
  %366 = vdwg.mxu0
  %vm367 = vcmask 80896
  %v368 = vsel %vm367, %v359, -inf
  %369 = vmax.xlane.f32.xlu0 %v368
  %v370 = vpop.xlane.xlu0 %369
  %v371 = vsel %vm367, %v364, -inf
  %372 = vmax.xlane.f32.xlu0 %v371
  %v373 = vpop.xlane.xlu0 %372
  %v374 = vsub.f32 %v359, %v370
  %v375 = vsub.f32 %v364, %v373
  %v376 = vmul.f32 %v374, 1.442695
  %v377 = vpow.pop %v376
  %v378 = vmul.f32 %v375, 1.442695
  %v379 = vpow.pop %v378
  %v380 = vsel %vm367, %v377, 0.0
  %381 = vadd.xlane.f32.xlu0 %v380
  %v382 = vpop.xlane.xlu0 %381
  %v383 = vsel %vm367, %v379, 0.0
  %384 = vadd.xlane.f32.xlu0 %v383
  %v385 = vpop.xlane.xlu0 %384
  %v386 = vrcp.pop %v382
  %v387 = vrcp.pop %v385
  %v388 = vmul.f32 %v377, %v386
  %v389 = vmul.f32 %v379, %v387
  %v390 = vld [vmem:[%s7] sm:$0xff]
  %v391 = vld [vmem:[%s7 + $0x8] sm:$0x3]
  %v392 = vld [vmem:[%s8] sm:$0xff]
  %v393 = vld [vmem:[%s8 + $0x8] sm:$0x3]
  %v395 = vsel %vm367, %v389, 0
  %vm397 = vcmask 1041408
  %v399 = vsel %vm397, %v393, 0
  %401 = vmatprep.subr.mxu0 0.0
  %402 = vmatpush1.msra.mxu0 0.0
  %403 = vmatprep.subr.mxu0 0.0
  %404 = vmatpush1.msra.mxu0 0.0
  %405 = vmatprep.subr.mxu0 0.0
  %406 = vmatpush1.msra.mxu0 0.0
  %407 = vmatprep.subr.mxu0 0.0
  %408 = vmatpush1.msra.mxu0 0.0
  %409 = vmatprep.subr.mxu0 0.0
  %410 = vmatpush1.msra.mxu0 0.0
  %411 = vmatprep.subr.mxu0 0.0
  %412 = vmatpush1.msra.mxu0 0.0
  %413 = vmatprep.subr.mxu0 0.0
  %414 = vmatpush1.msra.mxu0 0.0
  %415 = vmatprep.subr.mxu0 0.0
  %416 = vmatpush1.msra.mxu0 0.0
  %417 = vmatprep.subr.mxu0 0.0
  %418 = vmatpush1.msra.mxu0 0.0
  %419 = vmatprep.subr.mxu0 0.0
  %420 = vmatpush1.msra.mxu0 0.0
  %421 = vmatprep.subr.mxu0 0.0
  %422 = vmatpush1.msra.mxu0 0.0
  %423 = vmatprep.subr.mxu0 0.0
  %424 = vmatpush1.msra.mxu0 0.0
  %425 = vmatprep.subr.mxu0 0.0
  %426 = vmatpush1.msra.mxu0 0.0
  %427 = vmatprep.subr.mxu0 0.0
  %428 = vmatpush1.msra.mxu0 0.0
  %429 = vmatprep.subr.mxu0 0.0
  %430 = vmatpush1.msra.mxu0 %v399
  %431 = vmatprep.subr.mxu0 0.0
  %432 = vmatpush1.msra.mxu0 %v392
  %433 = vmatprep.subr.mxu0 0.0
  %434 = vmatpush2.msra.mxu0 0.0
  %435 = vmatprep.subr.mxu0 0.0
  %436 = vmatpush2.msra.mxu0 0.0
  %437 = vmatprep.subr.mxu0 0.0
  %438 = vmatpush2.msra.mxu0 0.0
  %439 = vmatprep.subr.mxu0 0.0
  %440 = vmatpush2.msra.mxu0 0.0
  %441 = vmatprep.subr.mxu0 0.0
  %442 = vmatpush2.msra.mxu0 0.0
  %443 = vmatprep.subr.mxu0 0.0
  %444 = vmatpush2.msra.mxu0 0.0
  %445 = vmatprep.subr.mxu0 0.0
  %446 = vmatpush2.msra.mxu0 0.0
  %447 = vmatprep.subr.mxu0 0.0
  %448 = vmatpush2.msra.mxu0 0.0
  %449 = vmatprep.subr.mxu0 0.0
  %450 = vmatpush2.msra.mxu0 0.0
  %451 = vmatprep.subr.mxu0 0.0
  %452 = vmatpush2.msra.mxu0 0.0
  %453 = vmatprep.subr.mxu0 0.0
  %454 = vmatpush2.msra.mxu0 0.0
  %455 = vmatprep.subr.mxu0 0.0
  %456 = vmatpush2.msra.mxu0 0.0
  %457 = vmatprep.subr.mxu0 0.0
  %458 = vmatpush2.msra.mxu0 0.0
  %459 = vmatprep.subr.mxu0 0.0
  %460 = vmatpush2.msra.mxu0 0.0
  %461 = vmatprep.subr.mxu0 0.0
  %462 = vmatpush2.msra.mxu0 0.0
  %463 = vmatprep.subr.mxu0 0.0
  %464 = vmatpush2.msra.mxu0 0.0
  %465 = vmatprep.mubr.f32.mxu0 0.0
  %466 = vmatmul.mubr.f32.gmra.mxu0 %v395
  %v467 = vpop.f32.mrf.mxu0
  %v468 = vadd.f32 0.0, %v467
  %v469 = vpop.f32.mrf.mxu0
  %470 = vdwg.mxu0
  %v472 = vsel %vm367, %v388, 0
  %v475 = vsel %vm397, %v391, 0
  %477 = vmatprep.subr.mxu0 0.0
  %478 = vmatpush1.msra.mxu0 0.0
  %479 = vmatprep.subr.mxu0 0.0
  %480 = vmatpush1.msra.mxu0 0.0
  %481 = vmatprep.subr.mxu0 0.0
  %482 = vmatpush1.msra.mxu0 0.0
  %483 = vmatprep.subr.mxu0 0.0
  %484 = vmatpush1.msra.mxu0 0.0
  %485 = vmatprep.subr.mxu0 0.0
  %486 = vmatpush1.msra.mxu0 0.0
  %487 = vmatprep.subr.mxu0 0.0
  %488 = vmatpush1.msra.mxu0 0.0
  %489 = vmatprep.subr.mxu0 0.0
  %490 = vmatpush1.msra.mxu0 0.0
  %491 = vmatprep.subr.mxu0 0.0
  %492 = vmatpush1.msra.mxu0 0.0
  %493 = vmatprep.subr.mxu0 0.0
  %494 = vmatpush1.msra.mxu0 0.0
  %495 = vmatprep.subr.mxu0 0.0
  %496 = vmatpush1.msra.mxu0 0.0
  %497 = vmatprep.subr.mxu0 0.0
  %498 = vmatpush1.msra.mxu0 0.0
  %499 = vmatprep.subr.mxu0 0.0
  %500 = vmatpush1.msra.mxu0 0.0
  %501 = vmatprep.subr.mxu0 0.0
  %502 = vmatpush1.msra.mxu0 0.0
  %503 = vmatprep.subr.mxu0 0.0
  %504 = vmatpush1.msra.mxu0 0.0
  %505 = vmatprep.subr.mxu0 0.0
  %506 = vmatpush1.msra.mxu0 %v475
  %507 = vmatprep.subr.mxu0 0.0
  %508 = vmatpush1.msra.mxu0 %v390
  %509 = vmatprep.subr.mxu0 0.0
  %510 = vmatpush2.msra.mxu0 0.0
  %511 = vmatprep.subr.mxu0 0.0
  %512 = vmatpush2.msra.mxu0 0.0
  %513 = vmatprep.subr.mxu0 0.0
  %514 = vmatpush2.msra.mxu0 0.0
  %515 = vmatprep.subr.mxu0 0.0
  %516 = vmatpush2.msra.mxu0 0.0
  %517 = vmatprep.subr.mxu0 0.0
  %518 = vmatpush2.msra.mxu0 0.0
  %519 = vmatprep.subr.mxu0 0.0
  %520 = vmatpush2.msra.mxu0 0.0
  %521 = vmatprep.subr.mxu0 0.0
  %522 = vmatpush2.msra.mxu0 0.0
  %523 = vmatprep.subr.mxu0 0.0
  %524 = vmatpush2.msra.mxu0 0.0
  %525 = vmatprep.subr.mxu0 0.0
  %526 = vmatpush2.msra.mxu0 0.0
  %527 = vmatprep.subr.mxu0 0.0
  %528 = vmatpush2.msra.mxu0 0.0
  %529 = vmatprep.subr.mxu0 0.0
  %530 = vmatpush2.msra.mxu0 0.0
  %531 = vmatprep.subr.mxu0 0.0
  %532 = vmatpush2.msra.mxu0 0.0
  %533 = vmatprep.subr.mxu0 0.0
  %534 = vmatpush2.msra.mxu0 0.0
  %535 = vmatprep.subr.mxu0 0.0
  %536 = vmatpush2.msra.mxu0 0.0
  %537 = vmatprep.subr.mxu0 0.0
  %538 = vmatpush2.msra.mxu0 0.0
  %539 = vmatprep.subr.mxu0 0.0
  %540 = vmatpush2.msra.mxu0 0.0
  %541 = vmatprep.mubr.f32.mxu0 0.0
  %542 = vmatmul.mubr.f32.gmra.mxu0 %v472
  %v543 = vpop.f32.mrf.mxu0
  %v544 = vadd.f32 %v468, %v543
  %v545 = vpop.f32.mrf.mxu0
  %546 = vdwg.mxu0
  %v547 = vld [vmem:[%s9] sm:$0x1]
  %v549 = vlaneseq
  %v550 = vshrl.u32 %v549, 7
  %v551 = vsub.s32 0, %v550
  %v552 = vrot.slane %v547, %v551
  %v554 = vadd.f32 %v544, %v552
  %555 = vst.msk [vmem:[%s10] sm:$0xff] %vm367, %v388
  %556 = vrot.lane.b32.xlu0 %v389, 10
  %v557 = vpop.permute.xlu0 %556
  %vm559 = vcmask 162896
  %560 = vst.msk [vmem:[%s10] sm:$0xff] %vm559, %v557
  %562 = vrot.lane.b32.xlu0 %v554, 20
  %v563 = vpop.permute.xlu0 %562
  %vm565 = vcmask 179360
  %566 = vst.msk [vmem:[%s10] sm:$0xff] %vm565, %v563
  // Predicated region
  $region42: #{fnn_forward.1} parent=0 // pred_check
    _
  $region43: #{fnn_forward.1} parent=0 // pred_check_branch
    %568 = sbr.rel (0) target = $region45
  $region44: #{fnn_forward.1} parent=0 // pred_region
    _
  $region45: #{fnn_forward.1} parent=0 // pred_fallthru
    _
  // Predicated region
  $region46: #{fnn_forward.1} parent=0 // pred_check
    _
  $region47: #{fnn_forward.1} parent=0 // pred_check_branch
    %570 = sbr.rel (0) target = $region49
  $region48: #{fnn_forward.1} parent=0 // pred_region
    _
  $region49: #{fnn_forward.1} parent=0 // pred_fallthru
    _

</llo_original>
